<compile_context>
chip_gen: v7x
topology: tpu7x:2x2x1
jax: 0.10.0
libtpu: 0.0.40
codegen_flags: <defaults>
</compile_context>

<pallas_src>
import functools

import jax
import jax.numpy as jnp
from jax.experimental import pallas as pl
from jax.experimental.pallas import tpu as pltpu

_LANE = 128


def _round_up(n, m):
    return ((n + m - 1) // m) * m


def qnet_kernel(x_ref, w1_ref, b1_ref, w2_ref, b2_ref, w3_ref, b3_ref, o_ref):
    """One batch tile of fc1 -> ReLU -> fc2 -> ReLU -> fc3 (f32 accumulation)."""
    # Cast to the weights' compute dtype on the VPU (free); MXU accumulates f32.
    x = x_ref[...].astype(w1_ref.dtype)

    # fc1 + ReLU.
    h1 = jnp.dot(x, w1_ref[...], preferred_element_type=jnp.float32)
    h1 = jnp.maximum(h1 + b1_ref[...], 0.0)

    # fc2 + ReLU.
    h2 = jnp.dot(h1.astype(w2_ref.dtype), w2_ref[...],
                 preferred_element_type=jnp.float32)
    h2 = jnp.maximum(h2 + b2_ref[...], 0.0)

    # fc3 (no activation).
    h3 = jnp.dot(h2.astype(w3_ref.dtype), w3_ref[...],
                 preferred_element_type=jnp.float32)
    o_ref[...] = (h3 + b3_ref[...]).astype(o_ref.dtype)


@functools.partial(jax.jit, static_argnames=("block_batch",))
def qnet_forward(x, params, *, block_batch=2048):
    """x: (batch, state_dim); params: (w1,b1,w2,b2,w3,b3) with w as (in,out)."""
    w1, b1, w2, b2, w3, b3 = params
    batch, state_dim = x.shape
    action_dim = w3.shape[1]

    # --- pad hidden widths up to a full 128-lane vreg (exact, zero-cost on MXU)
    h1p = _round_up(w1.shape[1], _LANE)
    h2p = _round_up(w2.shape[1], _LANE)
    w1p = jnp.pad(w1, ((0, 0), (0, h1p - w1.shape[1])))
    b1p = jnp.pad(b1, ((0, 0), (0, h1p - b1.shape[1]))).astype(jnp.float32)
    w2p = jnp.pad(w2, ((0, h1p - w2.shape[0]), (0, h2p - w2.shape[1])))
    b2p = jnp.pad(b2, ((0, 0), (0, h2p - b2.shape[1]))).astype(jnp.float32)
    w3p = jnp.pad(w3, ((0, h2p - w3.shape[0]), (0, 0)))
    b3f = b3.astype(jnp.float32)

    # --- batch tiling: big tiles amortize per-step overhead, multiple of 8.
    tm = min(block_batch, _round_up(batch, 8))
    padded = _round_up(batch, tm)
    if padded != batch:
        x = jnp.pad(x, ((0, padded - batch), (0, 0)))
    grid = (padded // tm,)

    resident = lambda i: (0, 0)  # same block every step -> fetched once, stays in VMEM
    tiled = lambda i: (i, 0)     # one batch tile per grid step (double-buffered)

    flops = 2 * padded * (state_dim * w1.shape[1]
                          + w1.shape[1] * w2.shape[1]
                          + w2.shape[1] * action_dim)
    param_bytes = sum(int(a.size) * a.dtype.itemsize
                      for a in (w1p, b1p, w2p, b2p, w3p, b3f))
    bytes_accessed = (padded * state_dim * x.dtype.itemsize
                      + padded * action_dim * 4
                      + param_bytes)

    out = pl.pallas_call(
        qnet_kernel,
        out_shape=jax.ShapeDtypeStruct((padded, action_dim), jnp.float32),
        grid=grid,
        in_specs=[
            pl.BlockSpec((tm, state_dim), tiled),   # x: streamed per tile
            pl.BlockSpec(w1p.shape, resident),
            pl.BlockSpec(b1p.shape, resident),
            pl.BlockSpec(w2p.shape, resident),
            pl.BlockSpec(b2p.shape, resident),
            pl.BlockSpec(w3p.shape, resident),
            pl.BlockSpec(b3f.shape, resident),
        ],
        out_specs=pl.BlockSpec((tm, action_dim), tiled),
        compiler_params=pltpu.CompilerParams(
            dimension_semantics=("parallel",)),      # megacore sharding on v7x
        cost_estimate=pl.CostEstimate(
            flops=flops, transcendentals=0, bytes_accessed=bytes_accessed),
    )(x, w1p, b1p, w2p, b2p, w3p, b3f)

    return out[:batch] if padded != batch else out


def init_params(key, state_dim, action_dim, dtype=jnp.float32):
    """Deterministic synthetic init (uniform, like PyTorch's default Linear)."""
    k1, k2, k3, k4, k5, k6 = jax.random.split(key, 6)

    def lin_init(kw, kb, fan_in, fan_out):
        bound = 1.0 / jnp.sqrt(fan_in)
        w = jax.random.uniform(kw, (fan_in, fan_out), jnp.float32, -bound, bound)
        b = jax.random.uniform(kb, (1, fan_out), jnp.float32, -bound, bound)
        return w.astype(dtype), b.astype(dtype)

    w1, b1 = lin_init(k1, k2, state_dim, 64)
    w2, b2 = lin_init(k3, k4, 64, 32)
    w3, b3 = lin_init(k5, k6, 32, action_dim)
    return (w1, b1, w2, b2, w3, b3)


if __name__ == "__main__":
    state_dim, action_dim = 8, 4
    key = jax.random.PRNGKey(0)
    kx, kp = jax.random.split(key)

    # Small batch, but large enough to exercise the tiled/pipelined grid
    # (2 tiles of 128, ragged tail zero-padded).
    batch = 200
    x = jax.random.normal(kx, (batch, state_dim), dtype=jnp.float32)

    # --- f32 params: exact check against the pure-JAX / PyTorch math.
    params = init_params(kp, state_dim, action_dim, dtype=jnp.float32)
    out = jax.block_until_ready(qnet_forward(x, params, block_batch=128))

    w1, b1, w2, b2, w3, b3 = params
    ref = jnp.maximum(x @ w1 + b1, 0.0)
    ref = jnp.maximum(ref @ w2 + b2, 0.0)
    ref = ref @ w3 + b3
    assert out.shape == (batch, action_dim)
    assert jnp.allclose(out, ref, atol=1e-4, rtol=1e-4)

    # --- bf16 params (f32 activations streamed, cast in-kernel, f32 accumulation):
    # compare against a reference applying the same casts.
    params_bf16 = jax.tree.map(lambda a: a.astype(jnp.bfloat16), params)
    out_bf16 = jax.block_until_ready(
        qnet_forward(x, params_bf16, block_batch=128))

    xb = x.astype(jnp.bfloat16)
    w1b, b1b, w2b, b2b, w3b, b3b = params_bf16
    r = jnp.maximum(
        jnp.dot(xb, w1b, preferred_element_type=jnp.float32)
        + b1b.astype(jnp.float32), 0.0)
    r = jnp.maximum(
        jnp.dot(r.astype(jnp.bfloat16), w2b, preferred_element_type=jnp.float32)
        + b2b.astype(jnp.float32), 0.0)
    r = (jnp.dot(r.astype(jnp.bfloat16), w3b, preferred_element_type=jnp.float32)
         + b3b.astype(jnp.float32))
    assert out_bf16.shape == (batch, action_dim)
    assert jnp.allclose(out_bf16, r, atol=1e-2, rtol=1e-2)

    print("KERNEL_OK")
</pallas_src>

<mosaic_0001>
module attributes {stable_mosaic.version = 11 : i64} {
  func.func @qnet_kernel(%arg0: i32, %arg1: memref<128x8xf32, #tpu.memory_space<vmem>>, %arg2: memref<8x128xf32, #tpu.memory_space<vmem>>, %arg3: memref<1x128xf32, #tpu.memory_space<vmem>>, %arg4: memref<128x128xf32, #tpu.memory_space<vmem>>, %arg5: memref<1x128xf32, #tpu.memory_space<vmem>>, %arg6: memref<128x4xf32, #tpu.memory_space<vmem>>, %arg7: memref<1x4xf32, #tpu.memory_space<vmem>>, %arg8: memref<128x4xf32, #tpu.memory_space<vmem>>) attributes {dimension_semantics = [#tpu.dimension_semantics<parallel>], iteration_bounds = array<i64: 2>, scalar_prefetch = 0 : i64, scratch_operands = 0 : i64, tpu.core_type = #tpu.core_type<tc>, window_params = [{transform_indices = @transform_0, window_bounds = array<i64: 128, 8>}, {pipeline_mode = #tpu.pipeline_mode<synchronous>, transform_indices = @transform_1, window_bounds = array<i64: 8, 128>}, {pipeline_mode = #tpu.pipeline_mode<synchronous>, transform_indices = @transform_2, window_bounds = array<i64: 1, 128>}, {pipeline_mode = #tpu.pipeline_mode<synchronous>, transform_indices = @transform_3, window_bounds = array<i64: 128, 128>}, {pipeline_mode = #tpu.pipeline_mode<synchronous>, transform_indices = @transform_4, window_bounds = array<i64: 1, 128>}, {pipeline_mode = #tpu.pipeline_mode<synchronous>, transform_indices = @transform_5, window_bounds = array<i64: 128, 4>}, {pipeline_mode = #tpu.pipeline_mode<synchronous>, transform_indices = @transform_6, window_bounds = array<i64: 1, 4>}, {transform_indices = @transform_7, window_bounds = array<i64: 128, 4>}]} {
    %c0 = arith.constant 0 : index
    %c0_0 = arith.constant 0 : index
    %0 = vector.load %arg1[%c0, %c0_0] : memref<128x8xf32, #tpu.memory_space<vmem>>, vector<128x8xf32>
    %c0_1 = arith.constant 0 : index
    %c0_2 = arith.constant 0 : index
    %1 = vector.load %arg2[%c0_1, %c0_2] : memref<8x128xf32, #tpu.memory_space<vmem>>, vector<8x128xf32>
    %cst = arith.constant dense<0.000000e+00> : vector<128x128xf32>
    %2 = tpu.matmul %0, %1, %cst {dimension_numbers = #tpu.dot_dimension_numbers<[1], [0], [0], [1], [0, 0, 1, 1], [], []>} : vector<128x8xf32>, vector<8x128xf32>, vector<128x128xf32> -> vector<128x128xf32>
    %c0_3 = arith.constant 0 : index
    %c0_4 = arith.constant 0 : index
    %3 = vector.load %arg3[%c0_3, %c0_4] : memref<1x128xf32, #tpu.memory_space<vmem>>, vector<1x128xf32>
    %4 = vector.broadcast %3 : vector<1x128xf32> to vector<128x128xf32>
    %5 = arith.addf %2, %4 : vector<128x128xf32>
    %cst_5 = arith.constant 0.000000e+00 : f32
    %6 = vector.broadcast %cst_5 : f32 to vector<128x128xf32>
    %7 = arith.maximumf %5, %6 : vector<128x128xf32>
    %c0_6 = arith.constant 0 : index
    %c0_7 = arith.constant 0 : index
    %8 = vector.load %arg4[%c0_6, %c0_7] : memref<128x128xf32, #tpu.memory_space<vmem>>, vector<128x128xf32>
    %cst_8 = arith.constant dense<0.000000e+00> : vector<128x128xf32>
    %9 = tpu.matmul %7, %8, %cst_8 {dimension_numbers = #tpu.dot_dimension_numbers<[1], [0], [0], [1], [0, 0, 1, 1], [], []>} : vector<128x128xf32>, vector<128x128xf32>, vector<128x128xf32> -> vector<128x128xf32>
    %c0_9 = arith.constant 0 : index
    %c0_10 = arith.constant 0 : index
    %10 = vector.load %arg5[%c0_9, %c0_10] : memref<1x128xf32, #tpu.memory_space<vmem>>, vector<1x128xf32>
    %11 = vector.broadcast %10 : vector<1x128xf32> to vector<128x128xf32>
    %12 = arith.addf %9, %11 : vector<128x128xf32>
    %cst_11 = arith.constant 0.000000e+00 : f32
    %13 = vector.broadcast %cst_11 : f32 to vector<128x128xf32>
    %14 = arith.maximumf %12, %13 : vector<128x128xf32>
    %c0_12 = arith.constant 0 : index
    %c0_13 = arith.constant 0 : index
    %15 = vector.load %arg6[%c0_12, %c0_13] : memref<128x4xf32, #tpu.memory_space<vmem>>, vector<128x4xf32>
    %cst_14 = arith.constant dense<0.000000e+00> : vector<128x4xf32>
    %16 = tpu.matmul %14, %15, %cst_14 {dimension_numbers = #tpu.dot_dimension_numbers<[1], [0], [0], [1], [0, 0, 1, 1], [], []>} : vector<128x128xf32>, vector<128x4xf32>, vector<128x4xf32> -> vector<128x4xf32>
    %c0_15 = arith.constant 0 : index
    %c0_16 = arith.constant 0 : index
    %17 = vector.load %arg7[%c0_15, %c0_16] : memref<1x4xf32, #tpu.memory_space<vmem>>, vector<1x4xf32>
    %18 = vector.broadcast %17 : vector<1x4xf32> to vector<128x4xf32>
    %19 = arith.addf %16, %18 : vector<128x4xf32>
    %c0_17 = arith.constant 0 : index
    %c0_18 = arith.constant 0 : index
    %20 = vector.load %arg8[%c0_17, %c0_18] : memref<128x4xf32, #tpu.memory_space<vmem>>, vector<128x4xf32>
    tpu.vector_store %arg8[%c0_17, %c0_18], %19 {strides = array<i32>} : memref<128x4xf32, #tpu.memory_space<vmem>>, vector<128x4xf32>,
    return
  }
  func.func @transform_0(%arg0: i32) -> (i32, i32) {
    %c0_i32 = arith.constant 0 : i32
    %c0_i32_0 = arith.constant 0 : i32
    return %arg0, %c0_i32 : i32, i32
  }
  func.func @transform_1(%arg0: i32) -> (i32, i32) {
    %c0_i32 = arith.constant 0 : i32
    %c0_i32_0 = arith.constant 0 : i32
    %c0_i32_1 = arith.constant 0 : i32
    return %c0_i32, %c0_i32_0 : i32, i32
  }
  func.func @transform_2(%arg0: i32) -> (i32, i32) {
    %c0_i32 = arith.constant 0 : i32
    %c0_i32_0 = arith.constant 0 : i32
    %c0_i32_1 = arith.constant 0 : i32
    return %c0_i32, %c0_i32_0 : i32, i32
  }
  func.func @transform_3(%arg0: i32) -> (i32, i32) {
    %c0_i32 = arith.constant 0 : i32
    %c0_i32_0 = arith.constant 0 : i32
    %c0_i32_1 = arith.constant 0 : i32
    return %c0_i32, %c0_i32_0 : i32, i32
  }
  func.func @transform_4(%arg0: i32) -> (i32, i32) {
    %c0_i32 = arith.constant 0 : i32
    %c0_i32_0 = arith.constant 0 : i32
    %c0_i32_1 = arith.constant 0 : i32
    return %c0_i32, %c0_i32_0 : i32, i32
  }
  func.func @transform_5(%arg0: i32) -> (i32, i32) {
    %c0_i32 = arith.constant 0 : i32
    %c0_i32_0 = arith.constant 0 : i32
    %c0_i32_1 = arith.constant 0 : i32
    return %c0_i32, %c0_i32_0 : i32, i32
  }
  func.func @transform_6(%arg0: i32) -> (i32, i32) {
    %c0_i32 = arith.constant 0 : i32
    %c0_i32_0 = arith.constant 0 : i32
    %c0_i32_1 = arith.constant 0 : i32
    return %c0_i32, %c0_i32_0 : i32, i32
  }
  func.func @transform_7(%arg0: i32) -> (i32, i32) {
    %c0_i32 = arith.constant 0 : i32
    %c0_i32_0 = arith.constant 0 : i32
    return %arg0, %c0_i32 : i32, i32
  }
}

</mosaic_0001>

<llo_original>
// kernel: qnet_forward.1
$region0: #{qnet_forward.1}
  #allocation0 [shape = 'u32[]', space=smem, size = 0x4, offset = 0x4, fixed_abs, tag = 'smem constant byte address 0x4 - core index']
  #allocation1 [shape = 'u32[144,128]{1,0:T(1,128)}', space=vmem, size = 0x12000, scoped, tag = 'internal scratch']
  %s0 = inlined_call_operand.vmem [shape: f32[256,8], index: 0, kind: input, shape index: {}]
  %s1 = inlined_call_operand.vmem [shape: f32[8,128], index: 1, kind: input, shape index: {}]
  %s2 = inlined_call_operand.vmem [shape: f32[1,128], index: 2, kind: input, shape index: {}]
  %s3 = inlined_call_operand.vmem [shape: f32[128,128], index: 3, kind: input, shape index: {}]
  %s4 = inlined_call_operand.vmem [shape: f32[1,128], index: 4, kind: input, shape index: {}]
  %s5 = inlined_call_operand.vmem [shape: f32[128,4], index: 5, kind: input, shape index: {}]
  %s6 = inlined_call_operand.vmem [shape: f32[1,4], index: 6, kind: input, shape index: {}]
  %s7 = inlined_call_operand.vmem [shape: f32[256,4], index: 7, kind: output, shape index: {}]
  %s8 = sld [smem:[#allocation0]]
  $region61: #{qnet_forward.1} parent=0
    _
  %s10 = ssub.s32 1, %s8
  %s11 = scalar_select 0, %s10, %s8
  loop: start=0, step=1, limit=4
  $region2: #{qnet_forward.1} parent=0 // loop_pre_header
    _
  $region3: #{qnet_forward.1} parent=0 // loop_header
    %s13 = sphi 0, %s17
    %p14 = scmp.ge.s32.totalorder %s13, 4
    %s23 = sphi 0, %s25
    %s26 = sphi 0, %s23
    %s27 = sphi 0, %s26
    %s43 = sphi 0, %s27
    %s47 = sphi 0, %s47
    %s49 = sphi 0, %s47
    %s50 = sphi 0, %s49
    %s64 = sphi 0, %s50
    %s68 = sphi 0, %s68
    %s70 = sphi 0, %s68
    %s71 = sphi 0, %s70
    %s85 = sphi 0, %s71
    %s89 = sphi 0, %s89
    %s91 = sphi 0, %s89
    %s92 = sphi 0, %s91
    %s106 = sphi 0, %s92
    %s110 = sphi 0, %s110
    %s112 = sphi 0, %s110
    %s113 = sphi 0, %s112
    %s127 = sphi 0, %s113
    %s131 = sphi 0, %s131
    %s133 = sphi 0, %s131
    %s134 = sphi 0, %s133
    %s148 = sphi 0, %s134
    %s152 = sphi 0, %s152
    %s154 = sphi 0, %s152
    %s155 = sphi 0, %s154
    %s169 = sphi 0, %s155
    %s175 = sphi 0, %s177
    %s178 = sphi 0, %s175
    %s179 = sphi 0, %s178
    %s195 = sphi 0, %s179
  $region4: #{qnet_forward.1} parent=0 // loop_header_branch
    %16 = sbr.rel (%p14) target = $region8
  $region5: #{qnet_forward.1} parent=0 // loop_body
    %s18 = ssub.s32 %s13, 1
    %s19 = ssub.s32 %s13, 2
    %s20 = sadd.s32 %s13, 1
    %s21 = ssub.s32 %s13, %s20
    %p22 = scmp.eq.s32.totalorder %s21, 0
    %s24 = sadd.s32 %s23, 1
    %s25 = scalar_select %p22, %s23, %s24
    %p28 = pneg %p22
    %p29 = scmp.eq.s32.totalorder %s13, 1
    %p30 = por %p28, %p29
    %p31 = scmp.ne.s32.totalorder %s23, %s26
    %p32 = scmp.eq.s32.totalorder %s13, 0
    %p33 = por %p31, %p32
    %p34 = scmp.ne.s32.totalorder %s23, %s26
    %p35 = scmp.eq.s32.totalorder %s18, 1
    %p36 = por %p34, %p35
    %p37 = scmp.ne.s32.totalorder %s26, %s27
    %p38 = scmp.eq.s32.totalorder %s18, 0
    %p39 = por %p37, %p38
    %p40 = scmp.ne.s32.totalorder %s26, %s27
    %p41 = scmp.eq.s32.totalorder %s19, 1
    %p42 = por %p40, %p41
    %p44 = scmp.ne.s32.totalorder %s27, %s43
    %p45 = scmp.eq.s32.totalorder %s19, 0
    %p46 = por %p44, %p45
    %s48 = sadd.s32 %s47, 1
    %p51 = scmp.eq.s32.totalorder %s13, 1
    %p52 = scmp.ne.s32.totalorder %s47, %s49
    %p53 = scmp.eq.s32.totalorder %s13, 0
    %p54 = por %p52, %p53
    %p55 = scmp.ne.s32.totalorder %s47, %s49
    %p56 = scmp.eq.s32.totalorder %s18, 1
    %p57 = por %p55, %p56
    %p58 = scmp.ne.s32.totalorder %s49, %s50
    %p59 = scmp.eq.s32.totalorder %s18, 0
    %p60 = por %p58, %p59
    %p61 = scmp.ne.s32.totalorder %s49, %s50
    %p62 = scmp.eq.s32.totalorder %s19, 1
    %p63 = por %p61, %p62
    %p65 = scmp.ne.s32.totalorder %s50, %s64
    %p66 = scmp.eq.s32.totalorder %s19, 0
    %p67 = por %p65, %p66
    %s69 = sadd.s32 %s68, 1
    %p72 = scmp.eq.s32.totalorder %s13, 1
    %p73 = scmp.ne.s32.totalorder %s68, %s70
    %p74 = scmp.eq.s32.totalorder %s13, 0
    %p75 = por %p73, %p74
    %p76 = scmp.ne.s32.totalorder %s68, %s70
    %p77 = scmp.eq.s32.totalorder %s18, 1
    %p78 = por %p76, %p77
    %p79 = scmp.ne.s32.totalorder %s70, %s71
    %p80 = scmp.eq.s32.totalorder %s18, 0
    %p81 = por %p79, %p80
    %p82 = scmp.ne.s32.totalorder %s70, %s71
    %p83 = scmp.eq.s32.totalorder %s19, 1
    %p84 = por %p82, %p83
    %p86 = scmp.ne.s32.totalorder %s71, %s85
    %p87 = scmp.eq.s32.totalorder %s19, 0
    %p88 = por %p86, %p87
    %s90 = sadd.s32 %s89, 1
    %p93 = scmp.eq.s32.totalorder %s13, 1
    %p94 = scmp.ne.s32.totalorder %s89, %s91
    %p95 = scmp.eq.s32.totalorder %s13, 0
    %p96 = por %p94, %p95
    %p97 = scmp.ne.s32.totalorder %s89, %s91
    %p98 = scmp.eq.s32.totalorder %s18, 1
    %p99 = por %p97, %p98
    %p100 = scmp.ne.s32.totalorder %s91, %s92
    %p101 = scmp.eq.s32.totalorder %s18, 0
    %p102 = por %p100, %p101
    %p103 = scmp.ne.s32.totalorder %s91, %s92
    %p104 = scmp.eq.s32.totalorder %s19, 1
    %p105 = por %p103, %p104
    %p107 = scmp.ne.s32.totalorder %s92, %s106
    %p108 = scmp.eq.s32.totalorder %s19, 0
    %p109 = por %p107, %p108
    %s111 = sadd.s32 %s110, 1
    %p114 = scmp.eq.s32.totalorder %s13, 1
    %p115 = scmp.ne.s32.totalorder %s110, %s112
    %p116 = scmp.eq.s32.totalorder %s13, 0
    %p117 = por %p115, %p116
    %p118 = scmp.ne.s32.totalorder %s110, %s112
    %p119 = scmp.eq.s32.totalorder %s18, 1
    %p120 = por %p118, %p119
    %p121 = scmp.ne.s32.totalorder %s112, %s113
    %p122 = scmp.eq.s32.totalorder %s18, 0
    %p123 = por %p121, %p122
    %p124 = scmp.ne.s32.totalorder %s112, %s113
    %p125 = scmp.eq.s32.totalorder %s19, 1
    %p126 = por %p124, %p125
    %p128 = scmp.ne.s32.totalorder %s113, %s127
    %p129 = scmp.eq.s32.totalorder %s19, 0
    %p130 = por %p128, %p129
    %s132 = sadd.s32 %s131, 1
    %p135 = scmp.eq.s32.totalorder %s13, 1
    %p136 = scmp.ne.s32.totalorder %s131, %s133
    %p137 = scmp.eq.s32.totalorder %s13, 0
    %p138 = por %p136, %p137
    %p139 = scmp.ne.s32.totalorder %s131, %s133
    %p140 = scmp.eq.s32.totalorder %s18, 1
    %p141 = por %p139, %p140
    %p142 = scmp.ne.s32.totalorder %s133, %s134
    %p143 = scmp.eq.s32.totalorder %s18, 0
    %p144 = por %p142, %p143
    %p145 = scmp.ne.s32.totalorder %s133, %s134
    %p146 = scmp.eq.s32.totalorder %s19, 1
    %p147 = por %p145, %p146
    %p149 = scmp.ne.s32.totalorder %s134, %s148
    %p150 = scmp.eq.s32.totalorder %s19, 0
    %p151 = por %p149, %p150
    %s153 = sadd.s32 %s152, 1
    %p156 = scmp.eq.s32.totalorder %s13, 1
    %p157 = scmp.ne.s32.totalorder %s152, %s154
    %p158 = scmp.eq.s32.totalorder %s13, 0
    %p159 = por %p157, %p158
    %p160 = scmp.ne.s32.totalorder %s152, %s154
    %p161 = scmp.eq.s32.totalorder %s18, 1
    %p162 = por %p160, %p161
    %p163 = scmp.ne.s32.totalorder %s154, %s155
    %p164 = scmp.eq.s32.totalorder %s18, 0
    %p165 = por %p163, %p164
    %p166 = scmp.ne.s32.totalorder %s154, %s155
    %p167 = scmp.eq.s32.totalorder %s19, 1
    %p168 = por %p166, %p167
    %p170 = scmp.ne.s32.totalorder %s155, %s169
    %p171 = scmp.eq.s32.totalorder %s19, 0
    %p172 = por %p170, %p171
    %s173 = ssub.s32 %s13, %s20
    %p174 = scmp.eq.s32.totalorder %s173, 0
    %s176 = sadd.s32 %s175, 1
    %s177 = scalar_select %p174, %s175, %s176
    %p180 = pneg %p174
    %p181 = scmp.eq.s32.totalorder %s13, 1
    %p182 = por %p180, %p181
    %p183 = scmp.ne.s32.totalorder %s175, %s178
    %p184 = scmp.eq.s32.totalorder %s13, 0
    %p185 = por %p183, %p184
    %p186 = scmp.ne.s32.totalorder %s175, %s178
    %p187 = scmp.eq.s32.totalorder %s18, 1
    %p188 = por %p186, %p187
    %p189 = scmp.ne.s32.totalorder %s178, %s179
    %p190 = scmp.eq.s32.totalorder %s18, 0
    %p191 = por %p189, %p190
    %p192 = scmp.ne.s32.totalorder %s178, %s179
    %p193 = scmp.eq.s32.totalorder %s19, 1
    %p194 = por %p192, %p193
    %p196 = scmp.ne.s32.totalorder %s179, %s195
    %p197 = scmp.eq.s32.totalorder %s19, 0
    %p198 = por %p196, %p197
    %p199 = scmp.le.s32.totalorder 1, %s13
    %p200 = scmp.lt.s32.totalorder %s13, 3
    %p201 = pnand %p199, %p200
    %p202 = pneg %p201
    // Predicated region
    $region9: #{qnet_forward.1} parent=5 // pred_check
      _
    $region10: #{qnet_forward.1} parent=5 // pred_check_branch
      %204 = sbr.rel (%p201) target = $region12
    $region11: #{qnet_forward.1} parent=5 // pred_region
      %s205 = ssub.s32 %s13, 1
      // Predicated region
      $region13: #{qnet_forward.1} parent=11 // pred_check
        %p206 = pneg %p60
      $region14: #{qnet_forward.1} parent=11 // pred_check_branch
        %208 = sbr.rel (%p206) target = $region16
      $region15: #{qnet_forward.1} parent=11 // pred_region
        _
      $region16: #{qnet_forward.1} parent=11 // pred_fallthru
        _
      // Predicated region
      $region17: #{qnet_forward.1} parent=11 // pred_check
        %p209 = pneg %p81
      $region18: #{qnet_forward.1} parent=11 // pred_check_branch
        %211 = sbr.rel (%p209) target = $region20
      $region19: #{qnet_forward.1} parent=11 // pred_region
        _
      $region20: #{qnet_forward.1} parent=11 // pred_fallthru
        _
      // Predicated region
      $region21: #{qnet_forward.1} parent=11 // pred_check
        %p212 = pneg %p102
      $region22: #{qnet_forward.1} parent=11 // pred_check_branch
        %214 = sbr.rel (%p212) target = $region24
      $region23: #{qnet_forward.1} parent=11 // pred_region
        _
      $region24: #{qnet_forward.1} parent=11 // pred_fallthru
        _
      // Predicated region
      $region25: #{qnet_forward.1} parent=11 // pred_check
        %p215 = pneg %p123
      $region26: #{qnet_forward.1} parent=11 // pred_check_branch
        %217 = sbr.rel (%p215) target = $region28
      $region27: #{qnet_forward.1} parent=11 // pred_region
        _
      $region28: #{qnet_forward.1} parent=11 // pred_fallthru
        _
      // Predicated region
      $region29: #{qnet_forward.1} parent=11 // pred_check
        %p218 = pneg %p144
      $region30: #{qnet_forward.1} parent=11 // pred_check_branch
        %220 = sbr.rel (%p218) target = $region32
      $region31: #{qnet_forward.1} parent=11 // pred_region
        _
      $region32: #{qnet_forward.1} parent=11 // pred_fallthru
        _
      // Predicated region
      $region33: #{qnet_forward.1} parent=11 // pred_check
        %p221 = pneg %p165
      $region34: #{qnet_forward.1} parent=11 // pred_check_branch
        %223 = sbr.rel (%p221) target = $region36
      $region35: #{qnet_forward.1} parent=11 // pred_region
        _
      $region36: #{qnet_forward.1} parent=11 // pred_fallthru
        _
    $region12: #{qnet_forward.1} parent=5 // pred_fallthru
      _
    %p224 = scmp.lt.s32.totalorder %s13, 2
    // Predicated region
    $region37: #{qnet_forward.1} parent=5 // pred_check
      %p225 = pneg %p224
    $region38: #{qnet_forward.1} parent=5 // pred_check_branch
      %227 = sbr.rel (%p225) target = $region40
    $region39: #{qnet_forward.1} parent=5 // pred_region
      // Predicated region
      $region41: #{qnet_forward.1} parent=39 // pred_check
        %p228 = pneg %p33
      $region42: #{qnet_forward.1} parent=39 // pred_check_branch
        %230 = sbr.rel (%p228) target = $region44
      $region43: #{qnet_forward.1} parent=39 // pred_region
        %s231 = smul.u32 16, %s13
        %p232 = scmp.lt.s32.totalorder %s231, 31
        %s233 = scalar_select %p232, %s231, 31
        %s234 = smul.addr %s233, 8
        %s235 = scalar_lea.vmem %s0, %s234
        %s236 = smul.u32 16, %s13
      $region44: #{qnet_forward.1} parent=39 // pred_fallthru
        _
    $region40: #{qnet_forward.1} parent=5 // pred_fallthru
      _
    %p237 = scmp.le.s32.totalorder 1, %s13
    %p238 = scmp.lt.s32.totalorder %s13, 3
    %p239 = pnand %p237, %p238
    %p240 = pneg %p239
    // Predicated region
    $region45: #{qnet_forward.1} parent=5 // pred_check
      _
    $region46: #{qnet_forward.1} parent=5 // pred_check_branch
      %242 = sbr.rel (%p239) target = $region48
    $region47: #{qnet_forward.1} parent=5 // pred_region
      %s243 = ssub.s32 %s13, 1
      %s244 = smul.u32 16, %s18
      %p245 = scmp.lt.s32.totalorder %s244, 31
      %s246 = scalar_select %p245, %s244, 31
      %s247 = smul.addr %s246, 8
      %s248 = scalar_lea.vmem %s0, %s247
      %p249 = pneg %p39
      %p250 = pneg %p36
      %p251 = pneg %p60
      %p252 = pneg %p57
      %p253 = pneg %p81
      %p254 = pneg %p78
      %p255 = pneg %p102
      %p256 = pneg %p99
      %p257 = pneg %p123
      %p258 = pneg %p120
      %p259 = pneg %p144
      %p260 = pneg %p141
      %p261 = pneg %p165
      %p262 = pneg %p162
      %p263 = pneg %p191
      %p264 = pneg %p188
      %s265 = smul.u32 16, %s18
      %p266 = scmp.lt.s32.totalorder %s265, 31
      %s267 = scalar_select %p266, %s265, 31
      %s268 = smul.addr %s267, 8
      %s269 = scalar_lea.vmem %s7, %s268
      %s270 = smul.u32 16, %s18
      %p271 = scmp.lt.s32.totalorder %s270, 31
      %s272 = scalar_select %p271, %s270, 31
      %s273 = smul.addr %s272, 8
      %s274 = scalar_lea.vmem %s0, %s273
      %s275 = smul.u32 16, %s18
      %s276 = smul.u32 16, %s18
      %p277 = scmp.lt.s32.totalorder %s276, 31
      %s278 = scalar_select %p277, %s276, 31
      %s279 = smul.addr %s278, 8
      %s280 = scalar_lea.vmem %s7, %s279
      %s281 = smul.u32 16, %s18
      %v282 = vld [vmem:[%s274] sm:$0xff]
      %v283 = vld [vmem:[%s274 + $0x8] sm:$0xff]
      %v284 = vld [vmem:[%s274 + $0x10] sm:$0xff]
      %v285 = vld [vmem:[%s274 + $0x18] sm:$0xff]
      %v286 = vld [vmem:[%s274 + $0x20] sm:$0xff]
      %v287 = vld [vmem:[%s274 + $0x28] sm:$0xff]
      %v288 = vld [vmem:[%s274 + $0x30] sm:$0xff]
      %v289 = vld [vmem:[%s274 + $0x38] sm:$0xff]
      %v290 = vld [vmem:[%s274 + $0x40] sm:$0xff]
      %v291 = vld [vmem:[%s274 + $0x48] sm:$0xff]
      %v292 = vld [vmem:[%s274 + $0x50] sm:$0xff]
      %v293 = vld [vmem:[%s274 + $0x58] sm:$0xff]
      %v294 = vld [vmem:[%s274 + $0x60] sm:$0xff]
      %v295 = vld [vmem:[%s274 + $0x68] sm:$0xff]
      %v296 = vld [vmem:[%s274 + $0x70] sm:$0xff]
      %v297 = vld [vmem:[%s274 + $0x78] sm:$0xff]
      %v298 = vld [vmem:[%s1] sm:$0xff]
      %v299 = vld [vmem:[%s2] sm:$0x1]
      %v301 = vlaneseq
      %v302 = vshrl.u32 %v301, 7
      %v303 = vsub.s32 0, %v302
      %v304 = vrot.slane %v299, %v303
      %vm306 = vcmask 64512
      %v308 = vsel %vm306, %v282, 0
      %v311 = vsel %vm306, %v283, 0
      %v314 = vsel %vm306, %v284, 0
      %v317 = vsel %vm306, %v285, 0
      %v320 = vsel %vm306, %v286, 0
      %v323 = vsel %vm306, %v287, 0
      %v326 = vsel %vm306, %v288, 0
      %v329 = vsel %vm306, %v289, 0
      %v332 = vsel %vm306, %v290, 0
      %v335 = vsel %vm306, %v291, 0
      %v338 = vsel %vm306, %v292, 0
      %v341 = vsel %vm306, %v293, 0
      %v344 = vsel %vm306, %v294, 0
      %v347 = vsel %vm306, %v295, 0
      %v350 = vsel %vm306, %v296, 0
      %v353 = vsel %vm306, %v297, 0
      %355 = vmatprep.subr.mxu0 0.0
      %356 = vmatpush1.msra.mxu0 %v298
      %357 = vmatprep.subr.mxu0 0.0
      %358 = vmatpush1.msra.mxu0 0.0
      %359 = vmatprep.subr.mxu0 0.0
      %360 = vmatpush1.msra.mxu0 0.0
      %361 = vmatprep.subr.mxu0 0.0
      %362 = vmatpush1.msra.mxu0 0.0
      %363 = vmatprep.subr.mxu0 0.0
      %364 = vmatpush1.msra.mxu0 0.0
      %365 = vmatprep.subr.mxu0 0.0
      %366 = vmatpush1.msra.mxu0 0.0
      %367 = vmatprep.subr.mxu0 0.0
      %368 = vmatpush1.msra.mxu0 0.0
      %369 = vmatprep.subr.mxu0 0.0
      %370 = vmatpush1.msra.mxu0 0.0
      %371 = vmatprep.subr.mxu0 0.0
      %372 = vmatpush1.msra.mxu0 0.0
      %373 = vmatprep.subr.mxu0 0.0
      %374 = vmatpush1.msra.mxu0 0.0
      %375 = vmatprep.subr.mxu0 0.0
      %376 = vmatpush1.msra.mxu0 0.0
      %377 = vmatprep.subr.mxu0 0.0
      %378 = vmatpush1.msra.mxu0 0.0
      %379 = vmatprep.subr.mxu0 0.0
      %380 = vmatpush1.msra.mxu0 0.0
      %381 = vmatprep.subr.mxu0 0.0
      %382 = vmatpush1.msra.mxu0 0.0
      %383 = vmatprep.subr.mxu0 0.0
      %384 = vmatpush1.msra.mxu0 0.0
      %385 = vmatprep.subr.mxu0 0.0
      %386 = vmatpush1.msra.mxu0 0.0
      %387 = vmatprep.subr.mxu0 0.0
      %388 = vmatpush1.msra.mxu0 0.0
      %389 = vmatprep.subr.mxu0 0.0
      %390 = vmatpush1.msra.mxu0 0.0
      %391 = vmatprep.subr.mxu0 0.0
      %392 = vmatpush1.msra.mxu0 0.0
      %393 = vmatprep.subr.mxu0 0.0
      %394 = vmatpush1.msra.mxu0 0.0
      %395 = vmatprep.subr.mxu0 0.0
      %396 = vmatpush1.msra.mxu0 0.0
      %397 = vmatprep.subr.mxu0 0.0
      %398 = vmatpush1.msra.mxu0 0.0
      %399 = vmatprep.subr.mxu0 0.0
      %400 = vmatpush1.msra.mxu0 0.0
      %401 = vmatprep.subr.mxu0 0.0
      %402 = vmatpush1.msra.mxu0 0.0
      %403 = vmatprep.subr.mxu0 0.0
      %404 = vmatpush1.msra.mxu0 0.0
      %405 = vmatprep.subr.mxu0 0.0
      %406 = vmatpush1.msra.mxu0 0.0
      %407 = vmatprep.subr.mxu0 0.0
      %408 = vmatpush1.msra.mxu0 0.0
      %409 = vmatprep.subr.mxu0 0.0
      %410 = vmatpush1.msra.mxu0 0.0
      %411 = vmatprep.subr.mxu0 0.0
      %412 = vmatpush1.msra.mxu0 0.0
      %413 = vmatprep.subr.mxu0 0.0
      %414 = vmatpush1.msra.mxu0 0.0
      %415 = vmatprep.subr.mxu0 0.0
      %416 = vmatpush1.msra.mxu0 0.0
      %417 = vmatprep.subr.mxu0 0.0
      %418 = vmatpush1.msra.mxu0 0.0
      %419 = vmatprep.mubr.f32.mxu0 0.0
      %420 = vmatmul.mubr.f32.gmra.mrb[0].mxu0 %v308
      %v421 = vpop.f32.mrb[0].mxu0
      %v422 = vadd.f32 %v304, %v421
      %v423 = vpop.f32.mrb[0].mxu0
      %424 = vmatprep.mubr.f32.mxu0 0.0
      %425 = vmatmul.mubr.f32.gmra.mrb[0].mxu0 %v311
      %v426 = vpop.f32.mrb[0].mxu0
      %v427 = vadd.f32 %v304, %v426
      %v428 = vpop.f32.mrb[0].mxu0
      %429 = vmatprep.mubr.f32.mxu0 0.0
      %430 = vmatmul.mubr.f32.gmra.mrb[0].mxu0 %v314
      %v431 = vpop.f32.mrb[0].mxu0
      %v432 = vadd.f32 %v304, %v431
      %v433 = vpop.f32.mrb[0].mxu0
      %434 = vmatprep.mubr.f32.mxu0 0.0
      %435 = vmatmul.mubr.f32.gmra.mrb[0].mxu0 %v317
      %v436 = vpop.f32.mrb[0].mxu0
      %v437 = vadd.f32 %v304, %v436
      %v438 = vpop.f32.mrb[0].mxu0
      %439 = vmatprep.mubr.f32.mxu0 0.0
      %440 = vmatmul.mubr.f32.gmra.mrb[0].mxu0 %v320
      %v441 = vpop.f32.mrb[0].mxu0
      %v442 = vadd.f32 %v304, %v441
      %v443 = vpop.f32.mrb[0].mxu0
      %444 = vmatprep.mubr.f32.mxu0 0.0
      %445 = vmatmul.mubr.f32.gmra.mrb[0].mxu0 %v323
      %v446 = vpop.f32.mrb[0].mxu0
      %v447 = vadd.f32 %v304, %v446
      %v448 = vpop.f32.mrb[0].mxu0
      %449 = vmatprep.mubr.f32.mxu0 0.0
      %450 = vmatmul.mubr.f32.gmra.mrb[0].mxu0 %v326
      %v451 = vpop.f32.mrb[0].mxu0
      %v452 = vadd.f32 %v304, %v451
      %v453 = vpop.f32.mrb[0].mxu0
      %454 = vmatprep.mubr.f32.mxu0 0.0
      %455 = vmatmul.mubr.f32.gmra.mrb[0].mxu0 %v329
      %v456 = vpop.f32.mrb[0].mxu0
      %v457 = vadd.f32 %v304, %v456
      %v458 = vpop.f32.mrb[0].mxu0
      %459 = vmatprep.mubr.f32.mxu0 0.0
      %460 = vmatmul.mubr.f32.gmra.mrb[0].mxu0 %v332
      %v461 = vpop.f32.mrb[0].mxu0
      %v462 = vadd.f32 %v304, %v461
      %v463 = vpop.f32.mrb[0].mxu0
      %464 = vmatprep.mubr.f32.mxu0 0.0
      %465 = vmatmul.mubr.f32.gmra.mrb[0].mxu0 %v335
      %v466 = vpop.f32.mrb[0].mxu0
      %v467 = vadd.f32 %v304, %v466
      %v468 = vpop.f32.mrb[0].mxu0
      %469 = vmatprep.mubr.f32.mxu0 0.0
      %470 = vmatmul.mubr.f32.gmra.mrb[0].mxu0 %v338
      %v471 = vpop.f32.mrb[0].mxu0
      %v472 = vadd.f32 %v304, %v471
      %v473 = vpop.f32.mrb[0].mxu0
      %474 = vmatprep.mubr.f32.mxu0 0.0
      %475 = vmatmul.mubr.f32.gmra.mrb[0].mxu0 %v341
      %v476 = vpop.f32.mrb[0].mxu0
      %v477 = vadd.f32 %v304, %v476
      %v478 = vpop.f32.mrb[0].mxu0
      %479 = vmatprep.mubr.f32.mxu0 0.0
      %480 = vmatmul.mubr.f32.gmra.mrb[0].mxu0 %v344
      %v481 = vpop.f32.mrb[0].mxu0
      %v482 = vadd.f32 %v304, %v481
      %v483 = vpop.f32.mrb[0].mxu0
      %484 = vmatprep.mubr.f32.mxu0 0.0
      %485 = vmatmul.mubr.f32.gmra.mrb[0].mxu0 %v347
      %v486 = vpop.f32.mrb[0].mxu0
      %v487 = vadd.f32 %v304, %v486
      %v488 = vpop.f32.mrb[0].mxu0
      %489 = vmatprep.mubr.f32.mxu0 0.0
      %490 = vmatmul.mubr.f32.gmra.mrb[0].mxu0 %v350
      %v491 = vpop.f32.mrb[0].mxu0
      %v492 = vadd.f32 %v304, %v491
      %v493 = vpop.f32.mrb[0].mxu0
      %494 = vmatprep.mubr.f32.mxu0 0.0
      %495 = vmatmul.mubr.f32.gmra.mrb[0].mxu0 %v353
      %v496 = vpop.f32.mrb[0].mxu0
      %v497 = vadd.f32 %v304, %v496
      %v498 = vpop.f32.mrb[0].mxu0
      %499 = vdwg.mxu0
      %v500 = vmax.f32 %v422, 0.0
      %v501 = vmax.f32 %v427, 0.0
      %v502 = vmax.f32 %v432, 0.0
      %v503 = vmax.f32 %v437, 0.0
      %v504 = vmax.f32 %v442, 0.0
      %v505 = vmax.f32 %v447, 0.0
      %v506 = vmax.f32 %v452, 0.0
      %v507 = vmax.f32 %v457, 0.0
      %v508 = vmax.f32 %v462, 0.0
      %v509 = vmax.f32 %v467, 0.0
      %v510 = vmax.f32 %v472, 0.0
      %v511 = vmax.f32 %v477, 0.0
      %v512 = vmax.f32 %v482, 0.0
      %v513 = vmax.f32 %v487, 0.0
      %v514 = vmax.f32 %v492, 0.0
      %v515 = vmax.f32 %v497, 0.0
      %v516 = vld [vmem:[%s3] sm:$0xff]
      %v517 = vld [vmem:[%s3 + $0x8] sm:$0xff]
      %v518 = vld [vmem:[%s3 + $0x10] sm:$0xff]
      %v519 = vld [vmem:[%s3 + $0x18] sm:$0xff]
      %v520 = vld [vmem:[%s3 + $0x20] sm:$0xff]
      %v521 = vld [vmem:[%s3 + $0x28] sm:$0xff]
      %v522 = vld [vmem:[%s3 + $0x30] sm:$0xff]
      %v523 = vld [vmem:[%s3 + $0x38] sm:$0xff]
      %v524 = vld [vmem:[%s3 + $0x40] sm:$0xff]
      %v525 = vld [vmem:[%s3 + $0x48] sm:$0xff]
      %v526 = vld [vmem:[%s3 + $0x50] sm:$0xff]
      %v527 = vld [vmem:[%s3 + $0x58] sm:$0xff]
      %v528 = vld [vmem:[%s3 + $0x60] sm:$0xff]
      %v529 = vld [vmem:[%s3 + $0x68] sm:$0xff]
      %v530 = vld [vmem:[%s3 + $0x70] sm:$0xff]
      %v531 = vld [vmem:[%s3 + $0x78] sm:$0xff]
      %v532 = vld [vmem:[%s4] sm:$0x1]
      %v534 = vlaneseq
      %v535 = vshrl.u32 %v534, 7
      %v536 = vsub.s32 0, %v535
      %v537 = vrot.slane %v532, %v536
      %539 = vmatprep.subr.mxu0 0.0
      %540 = vmatpush1.msra.mxu0 %v516
      %541 = vmatprep.subr.mxu0 0.0
      %542 = vmatpush1.msra.mxu0 %v517
      %543 = vmatprep.subr.mxu0 0.0
      %544 = vmatpush1.msra.mxu0 %v518
      %545 = vmatprep.subr.mxu0 0.0
      %546 = vmatpush1.msra.mxu0 %v519
      %547 = vmatprep.subr.mxu0 0.0
      %548 = vmatpush1.msra.mxu0 %v520
      %549 = vmatprep.subr.mxu0 0.0
      %550 = vmatpush1.msra.mxu0 %v521
      %551 = vmatprep.subr.mxu0 0.0
      %552 = vmatpush1.msra.mxu0 %v522
      %553 = vmatprep.subr.mxu0 0.0
      %554 = vmatpush1.msra.mxu0 %v523
      %555 = vmatprep.subr.mxu0 0.0
      %556 = vmatpush1.msra.mxu0 %v524
      %557 = vmatprep.subr.mxu0 0.0
      %558 = vmatpush1.msra.mxu0 %v525
      %559 = vmatprep.subr.mxu0 0.0
      %560 = vmatpush1.msra.mxu0 %v526
      %561 = vmatprep.subr.mxu0 0.0
      %562 = vmatpush1.msra.mxu0 %v527
      %563 = vmatprep.subr.mxu0 0.0
      %564 = vmatpush1.msra.mxu0 %v528
      %565 = vmatprep.subr.mxu0 0.0
      %566 = vmatpush1.msra.mxu0 %v529
      %567 = vmatprep.subr.mxu0 0.0
      %568 = vmatpush1.msra.mxu0 %v530
      %569 = vmatprep.subr.mxu0 0.0
      %570 = vmatpush1.msra.mxu0 %v531
      %571 = vmatprep.subr.mxu0 0.0
      %572 = vmatpush1.msra.mxu0 0.0
      %573 = vmatprep.subr.mxu0 0.0
      %574 = vmatpush1.msra.mxu0 0.0
      %575 = vmatprep.subr.mxu0 0.0
      %576 = vmatpush1.msra.mxu0 0.0
      %577 = vmatprep.subr.mxu0 0.0
      %578 = vmatpush1.msra.mxu0 0.0
      %579 = vmatprep.subr.mxu0 0.0
      %580 = vmatpush1.msra.mxu0 0.0
      %581 = vmatprep.subr.mxu0 0.0
      %582 = vmatpush1.msra.mxu0 0.0
      %583 = vmatprep.subr.mxu0 0.0
      %584 = vmatpush1.msra.mxu0 0.0
      %585 = vmatprep.subr.mxu0 0.0
      %586 = vmatpush1.msra.mxu0 0.0
      %587 = vmatprep.subr.mxu0 0.0
      %588 = vmatpush1.msra.mxu0 0.0
      %589 = vmatprep.subr.mxu0 0.0
      %590 = vmatpush1.msra.mxu0 0.0
      %591 = vmatprep.subr.mxu0 0.0
      %592 = vmatpush1.msra.mxu0 0.0
      %593 = vmatprep.subr.mxu0 0.0
      %594 = vmatpush1.msra.mxu0 0.0
      %595 = vmatprep.subr.mxu0 0.0
      %596 = vmatpush1.msra.mxu0 0.0
      %597 = vmatprep.subr.mxu0 0.0
      %598 = vmatpush1.msra.mxu0 0.0
      %599 = vmatprep.subr.mxu0 0.0
      %600 = vmatpush1.msra.mxu0 0.0
      %601 = vmatprep.subr.mxu0 0.0
      %602 = vmatpush1.msra.mxu0 0.0
      %603 = vmatprep.mubr.f32.mxu0 0.0
      %604 = vmatmul.mubr.f32.gmra.mrb[0].mxu0 %v500
      %v605 = vpop.f32.mrb[0].mxu0
      %v606 = vadd.f32 %v537, %v605
      %v607 = vpop.f32.mrb[0].mxu0
      %608 = vmatprep.mubr.f32.mxu0 0.0
      %609 = vmatmul.mubr.f32.gmra.mrb[0].mxu0 %v501
      %v610 = vpop.f32.mrb[0].mxu0
      %v611 = vadd.f32 %v537, %v610
      %v612 = vpop.f32.mrb[0].mxu0
      %613 = vmatprep.mubr.f32.mxu0 0.0
      %614 = vmatmul.mubr.f32.gmra.mrb[0].mxu0 %v502
      %v615 = vpop.f32.mrb[0].mxu0
      %v616 = vadd.f32 %v537, %v615
      %v617 = vpop.f32.mrb[0].mxu0
      %618 = vmatprep.mubr.f32.mxu0 0.0
      %619 = vmatmul.mubr.f32.gmra.mrb[0].mxu0 %v503
      %v620 = vpop.f32.mrb[0].mxu0
      %v621 = vadd.f32 %v537, %v620
      %v622 = vpop.f32.mrb[0].mxu0
      %623 = vmatprep.mubr.f32.mxu0 0.0
      %624 = vmatmul.mubr.f32.gmra.mrb[0].mxu0 %v504
      %v625 = vpop.f32.mrb[0].mxu0
      %v626 = vadd.f32 %v537, %v625
      %v627 = vpop.f32.mrb[0].mxu0
      %628 = vmatprep.mubr.f32.mxu0 0.0
      %629 = vmatmul.mubr.f32.gmra.mrb[0].mxu0 %v505
      %v630 = vpop.f32.mrb[0].mxu0
      %v631 = vadd.f32 %v537, %v630
      %v632 = vpop.f32.mrb[0].mxu0
      %633 = vmatprep.mubr.f32.mxu0 0.0
      %634 = vmatmul.mubr.f32.gmra.mrb[0].mxu0 %v506
      %v635 = vpop.f32.mrb[0].mxu0
      %v636 = vadd.f32 %v537, %v635
      %v637 = vpop.f32.mrb[0].mxu0
      %638 = vmatprep.mubr.f32.mxu0 0.0
      %639 = vmatmul.mubr.f32.gmra.mrb[0].mxu0 %v507
      %v640 = vpop.f32.mrb[0].mxu0
      %v641 = vadd.f32 %v537, %v640
      %v642 = vpop.f32.mrb[0].mxu0
      %643 = vmatprep.mubr.f32.mxu0 0.0
      %644 = vmatmul.mubr.f32.gmra.mrb[0].mxu0 %v508
      %v645 = vpop.f32.mrb[0].mxu0
      %v646 = vadd.f32 %v537, %v645
      %v647 = vpop.f32.mrb[0].mxu0
      %648 = vmatprep.mubr.f32.mxu0 0.0
      %649 = vmatmul.mubr.f32.gmra.mrb[0].mxu0 %v509
      %v650 = vpop.f32.mrb[0].mxu0
      %v651 = vadd.f32 %v537, %v650
      %v652 = vpop.f32.mrb[0].mxu0
      %653 = vmatprep.mubr.f32.mxu0 0.0
      %654 = vmatmul.mubr.f32.gmra.mrb[0].mxu0 %v510
      %v655 = vpop.f32.mrb[0].mxu0
      %v656 = vadd.f32 %v537, %v655
      %v657 = vpop.f32.mrb[0].mxu0
      %658 = vmatprep.mubr.f32.mxu0 0.0
      %659 = vmatmul.mubr.f32.gmra.mrb[0].mxu0 %v511
      %v660 = vpop.f32.mrb[0].mxu0
      %v661 = vadd.f32 %v537, %v660
      %v662 = vpop.f32.mrb[0].mxu0
      %663 = vmatprep.mubr.f32.mxu0 0.0
      %664 = vmatmul.mubr.f32.gmra.mrb[0].mxu0 %v512
      %v665 = vpop.f32.mrb[0].mxu0
      %v666 = vadd.f32 %v537, %v665
      %v667 = vpop.f32.mrb[0].mxu0
      %668 = vmatprep.mubr.f32.mxu0 0.0
      %669 = vmatmul.mubr.f32.gmra.mrb[0].mxu0 %v513
      %v670 = vpop.f32.mrb[0].mxu0
      %v671 = vadd.f32 %v537, %v670
      %v672 = vpop.f32.mrb[0].mxu0
      %673 = vmatprep.mubr.f32.mxu0 0.0
      %674 = vmatmul.mubr.f32.gmra.mrb[0].mxu0 %v514
      %v675 = vpop.f32.mrb[0].mxu0
      %v676 = vadd.f32 %v537, %v675
      %v677 = vpop.f32.mrb[0].mxu0
      %678 = vmatprep.mubr.f32.mxu0 0.0
      %679 = vmatmul.mubr.f32.gmra.mrb[0].mxu0 %v515
      %v680 = vpop.f32.mrb[0].mxu0
      %v681 = vadd.f32 %v537, %v680
      %v682 = vpop.f32.mrb[0].mxu0
      %683 = vdwg.mxu0
      %v684 = vmax.f32 %v606, 0.0
      %v685 = vmax.f32 %v611, 0.0
      %v686 = vmax.f32 %v616, 0.0
      %v687 = vmax.f32 %v621, 0.0
      %v688 = vmax.f32 %v626, 0.0
      %v689 = vmax.f32 %v631, 0.0
      %v690 = vmax.f32 %v636, 0.0
      %v691 = vmax.f32 %v641, 0.0
      %v692 = vmax.f32 %v646, 0.0
      %v693 = vmax.f32 %v651, 0.0
      %v694 = vmax.f32 %v656, 0.0
      %v695 = vmax.f32 %v661, 0.0
      %v696 = vmax.f32 %v666, 0.0
      %v697 = vmax.f32 %v671, 0.0
      %v698 = vmax.f32 %v676, 0.0
      %v699 = vmax.f32 %v681, 0.0
      %v700 = vld [vmem:[%s5] sm:$0xff]
      %v701 = vld [vmem:[%s5 + $0x8] sm:$0xff]
      %v702 = vld [vmem:[%s5 + $0x10] sm:$0xff]
      %v703 = vld [vmem:[%s5 + $0x18] sm:$0xff]
      %v704 = vld [vmem:[%s5 + $0x20] sm:$0xff]
      %v705 = vld [vmem:[%s5 + $0x28] sm:$0xff]
      %v706 = vld [vmem:[%s5 + $0x30] sm:$0xff]
      %v707 = vld [vmem:[%s5 + $0x38] sm:$0xff]
      %v708 = vld [vmem:[%s5 + $0x40] sm:$0xff]
      %v709 = vld [vmem:[%s5 + $0x48] sm:$0xff]
      %v710 = vld [vmem:[%s5 + $0x50] sm:$0xff]
      %v711 = vld [vmem:[%s5 + $0x58] sm:$0xff]
      %v712 = vld [vmem:[%s5 + $0x60] sm:$0xff]
      %v713 = vld [vmem:[%s5 + $0x68] sm:$0xff]
      %v714 = vld [vmem:[%s5 + $0x70] sm:$0xff]
      %v715 = vld [vmem:[%s5 + $0x78] sm:$0xff]
      %v716 = vld [vmem:[%s6] sm:$0x1]
      %v718 = vlaneseq
      %v719 = vshrl.u32 %v718, 7
      %v720 = vsub.s32 0, %v719
      %v721 = vrot.slane %v716, %v720
      %723 = vmatprep.subr.mxu0 0.0
      %724 = vmatpush1.msra.mxu0 %v700
      %725 = vmatprep.subr.mxu0 0.0
      %726 = vmatpush1.msra.mxu0 %v701
      %727 = vmatprep.subr.mxu0 0.0
      %728 = vmatpush1.msra.mxu0 %v702
      %729 = vmatprep.subr.mxu0 0.0
      %730 = vmatpush1.msra.mxu0 %v703
      %731 = vmatprep.subr.mxu0 0.0
      %732 = vmatpush1.msra.mxu0 %v704
      %733 = vmatprep.subr.mxu0 0.0
      %734 = vmatpush1.msra.mxu0 %v705
      %735 = vmatprep.subr.mxu0 0.0
      %736 = vmatpush1.msra.mxu0 %v706
      %737 = vmatprep.subr.mxu0 0.0
      %738 = vmatpush1.msra.mxu0 %v707
      %739 = vmatprep.subr.mxu0 0.0
      %740 = vmatpush1.msra.mxu0 %v708
      %741 = vmatprep.subr.mxu0 0.0
      %742 = vmatpush1.msra.mxu0 %v709
      %743 = vmatprep.subr.mxu0 0.0
      %744 = vmatpush1.msra.mxu0 %v710
      %745 = vmatprep.subr.mxu0 0.0
      %746 = vmatpush1.msra.mxu0 %v711
      %747 = vmatprep.subr.mxu0 0.0
      %748 = vmatpush1.msra.mxu0 %v712
      %749 = vmatprep.subr.mxu0 0.0
      %750 = vmatpush1.msra.mxu0 %v713
      %751 = vmatprep.subr.mxu0 0.0
      %752 = vmatpush1.msra.mxu0 %v714
      %753 = vmatprep.subr.mxu0 0.0
      %754 = vmatpush1.msra.mxu0 %v715
      %755 = vmatprep.subr.mxu0 0.0
      %756 = vmatpush1.msra.mxu0 0.0
      %757 = vmatprep.subr.mxu0 0.0
      %758 = vmatpush1.msra.mxu0 0.0
      %759 = vmatprep.subr.mxu0 0.0
      %760 = vmatpush1.msra.mxu0 0.0
      %761 = vmatprep.subr.mxu0 0.0
      %762 = vmatpush1.msra.mxu0 0.0
      %763 = vmatprep.subr.mxu0 0.0
      %764 = vmatpush1.msra.mxu0 0.0
      %765 = vmatprep.subr.mxu0 0.0
      %766 = vmatpush1.msra.mxu0 0.0
      %767 = vmatprep.subr.mxu0 0.0
      %768 = vmatpush1.msra.mxu0 0.0
      %769 = vmatprep.subr.mxu0 0.0
      %770 = vmatpush1.msra.mxu0 0.0
      %771 = vmatprep.subr.mxu0 0.0
      %772 = vmatpush1.msra.mxu0 0.0
      %773 = vmatprep.subr.mxu0 0.0
      %774 = vmatpush1.msra.mxu0 0.0
      %775 = vmatprep.subr.mxu0 0.0
      %776 = vmatpush1.msra.mxu0 0.0
      %777 = vmatprep.subr.mxu0 0.0
      %778 = vmatpush1.msra.mxu0 0.0
      %779 = vmatprep.subr.mxu0 0.0
      %780 = vmatpush1.msra.mxu0 0.0
      %781 = vmatprep.subr.mxu0 0.0
      %782 = vmatpush1.msra.mxu0 0.0
      %783 = vmatprep.subr.mxu0 0.0
      %784 = vmatpush1.msra.mxu0 0.0
      %785 = vmatprep.subr.mxu0 0.0
      %786 = vmatpush1.msra.mxu0 0.0
      %787 = vmatprep.mubr.f32.mxu0 0.0
      %788 = vmatmul.mubr.f32.gmra.mrb[0].mxu0 %v684
      %v789 = vpop.f32.mrb[0].mxu0
      %v790 = vadd.f32 %v721, %v789
      %v791 = vpop.f32.mrb[0].mxu0
      %792 = vmatprep.mubr.f32.mxu0 0.0
      %793 = vmatmul.mubr.f32.gmra.mrb[0].mxu0 %v685
      %v794 = vpop.f32.mrb[0].mxu0
      %v795 = vadd.f32 %v721, %v794
      %v796 = vpop.f32.mrb[0].mxu0
      %797 = vmatprep.mubr.f32.mxu0 0.0
      %798 = vmatmul.mubr.f32.gmra.mrb[0].mxu0 %v686
      %v799 = vpop.f32.mrb[0].mxu0
      %v800 = vadd.f32 %v721, %v799
      %v801 = vpop.f32.mrb[0].mxu0
      %802 = vmatprep.mubr.f32.mxu0 0.0
      %803 = vmatmul.mubr.f32.gmra.mrb[0].mxu0 %v687
      %v804 = vpop.f32.mrb[0].mxu0
      %v805 = vadd.f32 %v721, %v804
      %v806 = vpop.f32.mrb[0].mxu0
      %807 = vmatprep.mubr.f32.mxu0 0.0
      %808 = vmatmul.mubr.f32.gmra.mrb[0].mxu0 %v688
      %v809 = vpop.f32.mrb[0].mxu0
      %v810 = vadd.f32 %v721, %v809
      %v811 = vpop.f32.mrb[0].mxu0
      %812 = vmatprep.mubr.f32.mxu0 0.0
      %813 = vmatmul.mubr.f32.gmra.mrb[0].mxu0 %v689
      %v814 = vpop.f32.mrb[0].mxu0
      %v815 = vadd.f32 %v721, %v814
      %v816 = vpop.f32.mrb[0].mxu0
      %817 = vmatprep.mubr.f32.mxu0 0.0
      %818 = vmatmul.mubr.f32.gmra.mrb[0].mxu0 %v690
      %v819 = vpop.f32.mrb[0].mxu0
      %v820 = vadd.f32 %v721, %v819
      %v821 = vpop.f32.mrb[0].mxu0
      %822 = vmatprep.mubr.f32.mxu0 0.0
      %823 = vmatmul.mubr.f32.gmra.mrb[0].mxu0 %v691
      %v824 = vpop.f32.mrb[0].mxu0
      %v825 = vadd.f32 %v721, %v824
      %v826 = vpop.f32.mrb[0].mxu0
      %827 = vmatprep.mubr.f32.mxu0 0.0
      %828 = vmatmul.mubr.f32.gmra.mrb[0].mxu0 %v692
      %v829 = vpop.f32.mrb[0].mxu0
      %v830 = vadd.f32 %v721, %v829
      %v831 = vpop.f32.mrb[0].mxu0
      %832 = vmatprep.mubr.f32.mxu0 0.0
      %833 = vmatmul.mubr.f32.gmra.mrb[0].mxu0 %v693
      %v834 = vpop.f32.mrb[0].mxu0
      %v835 = vadd.f32 %v721, %v834
      %v836 = vpop.f32.mrb[0].mxu0
      %837 = vmatprep.mubr.f32.mxu0 0.0
      %838 = vmatmul.mubr.f32.gmra.mrb[0].mxu0 %v694
      %v839 = vpop.f32.mrb[0].mxu0
      %v840 = vadd.f32 %v721, %v839
      %v841 = vpop.f32.mrb[0].mxu0
      %842 = vmatprep.mubr.f32.mxu0 0.0
      %843 = vmatmul.mubr.f32.gmra.mrb[0].mxu0 %v695
      %v844 = vpop.f32.mrb[0].mxu0
      %v845 = vadd.f32 %v721, %v844
      %v846 = vpop.f32.mrb[0].mxu0
      %847 = vmatprep.mubr.f32.mxu0 0.0
      %848 = vmatmul.mubr.f32.gmra.mrb[0].mxu0 %v696
      %v849 = vpop.f32.mrb[0].mxu0
      %v850 = vadd.f32 %v721, %v849
      %v851 = vpop.f32.mrb[0].mxu0
      %852 = vmatprep.mubr.f32.mxu0 0.0
      %853 = vmatmul.mubr.f32.gmra.mrb[0].mxu0 %v697
      %v854 = vpop.f32.mrb[0].mxu0
      %v855 = vadd.f32 %v721, %v854
      %v856 = vpop.f32.mrb[0].mxu0
      %857 = vmatprep.mubr.f32.mxu0 0.0
      %858 = vmatmul.mubr.f32.gmra.mrb[0].mxu0 %v698
      %v859 = vpop.f32.mrb[0].mxu0
      %v860 = vadd.f32 %v721, %v859
      %v861 = vpop.f32.mrb[0].mxu0
      %862 = vmatprep.mubr.f32.mxu0 0.0
      %863 = vmatmul.mubr.f32.gmra.mrb[0].mxu0 %v699
      %v864 = vpop.f32.mrb[0].mxu0
      %v865 = vadd.f32 %v721, %v864
      %v866 = vpop.f32.mrb[0].mxu0
      %867 = vdwg.mxu0
      %vm868 = vcmask 31744
      %869 = vst.msk [vmem:[%s280] sm:$0xff] %vm868, %v790
      %870 = vst.msk [vmem:[%s280 + $0x8] sm:$0xff] %vm868, %v795
      %871 = vst.msk [vmem:[%s280 + $0x10] sm:$0xff] %vm868, %v800
      %872 = vst.msk [vmem:[%s280 + $0x18] sm:$0xff] %vm868, %v805
      %873 = vst.msk [vmem:[%s280 + $0x20] sm:$0xff] %vm868, %v810
      %874 = vst.msk [vmem:[%s280 + $0x28] sm:$0xff] %vm868, %v815
      %875 = vst.msk [vmem:[%s280 + $0x30] sm:$0xff] %vm868, %v820
      %876 = vst.msk [vmem:[%s280 + $0x38] sm:$0xff] %vm868, %v825
      %877 = vst.msk [vmem:[%s280 + $0x40] sm:$0xff] %vm868, %v830
      %878 = vst.msk [vmem:[%s280 + $0x48] sm:$0xff] %vm868, %v835
      %879 = vst.msk [vmem:[%s280 + $0x50] sm:$0xff] %vm868, %v840
      %880 = vst.msk [vmem:[%s280 + $0x58] sm:$0xff] %vm868, %v845
      %881 = vst.msk [vmem:[%s280 + $0x60] sm:$0xff] %vm868, %v850
      %882 = vst.msk [vmem:[%s280 + $0x68] sm:$0xff] %vm868, %v855
      %883 = vst.msk [vmem:[%s280 + $0x70] sm:$0xff] %vm868, %v860
      %884 = vst.msk [vmem:[%s280 + $0x78] sm:$0xff] %vm868, %v865
      %s885 = smul.u32 16, %s18
      %p886 = scmp.lt.s32.totalorder %s885, 31
      %s887 = scalar_select %p886, %s885, 31
      %s888 = smul.addr %s887, 8
      %s889 = scalar_lea.vmem %s7, %s888
      // Predicated region
      $region49: #{qnet_forward.1} parent=47 // pred_check
        %p890 = pneg %p188
      $region50: #{qnet_forward.1} parent=47 // pred_check_branch
        %892 = sbr.rel (%p890) target = $region52
      $region51: #{qnet_forward.1} parent=47 // pred_region
        %s893 = smul.u32 16, %s18
      $region52: #{qnet_forward.1} parent=47 // pred_fallthru
        _
    $region48: #{qnet_forward.1} parent=5 // pred_fallthru
      _
    %p894 = scmp.le.s32.totalorder 2, %s13
    // Predicated region
    $region53: #{qnet_forward.1} parent=5 // pred_check
      %p895 = pneg %p894
    $region54: #{qnet_forward.1} parent=5 // pred_check_branch
      %897 = sbr.rel (%p895) target = $region56
    $region55: #{qnet_forward.1} parent=5 // pred_region
      %s898 = ssub.s32 %s13, 2
      // Predicated region
      $region57: #{qnet_forward.1} parent=55 // pred_check
        %p899 = pneg %p194
      $region58: #{qnet_forward.1} parent=55 // pred_check_branch
        %901 = sbr.rel (%p899) target = $region60
      $region59: #{qnet_forward.1} parent=55 // pred_region
        %s902 = smul.u32 16, %s19
        %p903 = scmp.lt.s32.totalorder %s902, 31
        %s904 = scalar_select %p903, %s902, 31
        %s905 = smul.addr %s904, 8
        %s906 = scalar_lea.vmem %s7, %s905
      $region60: #{qnet_forward.1} parent=55 // pred_fallthru
        _
    $region56: #{qnet_forward.1} parent=5 // pred_fallthru
      _
  $region6: #{qnet_forward.1} parent=0 // loop_footer
    %s17 = sadd.s32 1, %s13
  $region7: #{qnet_forward.1} parent=0 // loop_footer_branch
    %12 = sbr.rel target = $region3
  $region8: #{qnet_forward.1} parent=0 // loop_exit
    _

</llo_original>
